<compile_context>
chip_gen: v6e
topology: v6e:2x2x1
jax: 0.10.0
libtpu: 0.0.40
codegen_flags: <defaults>
</compile_context>

<pallas_src>
import functools
import math

import jax
import jax.numpy as jnp
from jax import lax
from jax.experimental import pallas as pl
from jax.experimental.pallas import tpu as pltpu

_LANES = 128


def _device_defaults():
    """Per-generation defaults: (num_slices, per-input block bytes, VMEM budget)."""
    kind = ""
    vmem_bytes = None
    try:
        kind = jax.devices()[0].device_kind.lower()
    except Exception:
        pass
    try:
        vmem_bytes = int(pltpu.get_tpu_info().vmem_capacity_bytes)
    except Exception:
        vmem_bytes = None
    if vmem_bytes is None:
        # v7x: 64 MiB / TensorCore; v4 / v5e / v5p / v6e: 128 MiB; v2/v3: 16 MiB.
        if "v7" in kind:
            vmem_bytes = 64 * 1024 * 1024
        elif "v2" in kind or "v3" in kind:
            vmem_bytes = 16 * 1024 * 1024
        else:
            vmem_bytes = 128 * 1024 * 1024
    # Megacore parts: grid axes marked "parallel" are sharded over 2 TensorCores.
    megacore = ("v7" in kind or "v4" in kind
                or ("v5" in kind and "lite" not in kind and "5e" not in kind))
    num_slices = 2 if megacore else 1
    vmem_budget = max(12 * 1024 * 1024, (vmem_bytes * 3) // 4)
    if vmem_bytes >= 96 * 1024 * 1024:
        block_bytes = 8 * 1024 * 1024   # v4/v5e/v5p/v6e: per-step overhead -> ~3-7%
    elif vmem_bytes >= 48 * 1024 * 1024:
        block_bytes = 6 * 1024 * 1024   # v7x: 2 inputs x 2 buffers x 6 MiB < 48 MiB
    else:
        block_bytes = 2 * 1024 * 1024   # small-VMEM parts (v2/v3)
    return num_slices, block_bytes, vmem_budget


def _make_kernel(r_eff, block_lanes, chunk_lanes, steps_per_slice, total_blocks,
                 n_eff, has_tail, needs_clamp):
    """Kernel over grid (num_slices, steps_per_slice).

    Each step streams one (r_eff, block_lanes) tile of logits & targets and
    accumulates, per slice, two lane-resident partial sums into the resident
    output block:  out[slice, 0] += sum(p*t)   out[slice, 1] += sum(p + t).
    """
    num_chunks = block_lanes // chunk_lanes

    def accumulate(x_ref, t_ref, o_ref, blk, masked):
        def chunk_body(g, carry):
            acc_i, acc_s = carry
            start = pl.multiple_of(g * chunk_lanes, chunk_lanes)
            x = x_ref[:, pl.ds(start, chunk_lanes)].astype(jnp.float32)
            t = t_ref[:, pl.ds(start, chunk_lanes)].astype(jnp.float32)
            # sigmoid(x) = 0.5 * tanh(x/2) + 0.5: one EUP op/element.
            p = 0.5 * jnp.tanh(0.5 * x) + 0.5
            if masked:
                # Only the final block overruns the array; zero its garbage lanes.
                col = lax.broadcasted_iota(jnp.int32, (r_eff, chunk_lanes), 1)
                valid = (blk * block_lanes + start + col) < n_eff
                p = jnp.where(valid, p, 0.0)
                t = jnp.where(valid, t, 0.0)
            acc_i = acc_i + jnp.sum(p * t, axis=1, keepdims=True)
            acc_s = acc_s + jnp.sum(p + t, axis=1, keepdims=True)
            return acc_i, acc_s

        zeros = jnp.zeros((r_eff, 1), jnp.float32)
        acc_i, acc_s = lax.fori_loop(0, num_chunks, chunk_body, (zeros, zeros))
        o_ref[0, 0, :, :] += acc_i
        o_ref[0, 1, :, :] += acc_s

    def kernel(x_ref, t_ref, o_ref):
        i = pl.program_id(0)
        j = pl.program_id(1)

        @pl.when(j == 0)
        def _init():
            o_ref[...] = jnp.zeros_like(o_ref)

        blk = i * steps_per_slice + j  # raw block index (>= total_blocks for dups)

        if has_tail:
            @pl.when(blk == total_blocks - 1)
            def _tail():  # masked: the last block extends past the array
                accumulate(x_ref, t_ref, o_ref, blk, True)

            @pl.when(blk < total_blocks - 1)
            def _main():  # mask-free steady state; dup blocks skipped
                accumulate(x_ref, t_ref, o_ref, blk, False)
        elif needs_clamp:
            @pl.when(blk < total_blocks)
            def _main():  # skip clamped duplicate blocks
                accumulate(x_ref, t_ref, o_ref, blk, False)
        else:
            accumulate(x_ref, t_ref, o_ref, blk, False)

    return kernel


@functools.partial(
    jax.jit,
    static_argnames=("smooth", "ignore_index", "num_slices", "target_block_bytes",
                     "chunk_elems"),
)
def dice_loss_4_brats(predict, target, *, smooth=1.0, ignore_index=None,
                      num_slices=None, target_block_bytes=None, chunk_elems=16384):
    assert predict.shape == target.shape, (predict.shape, target.shape)
    assert predict.ndim >= 3
    b, c = predict.shape[0], predict.shape[1]
    r = b * c
    n = math.prod(predict.shape[2:])

    default_slices, default_block_bytes, vmem_budget = _device_defaults()
    if num_slices is None:
        num_slices = default_slices
    if target_block_bytes is None:
        target_block_bytes = default_block_bytes

    x_item = predict.dtype.itemsize
    t_item = target.dtype.itemsize

    # Row split: view each (b, c) row as `s` sub-rows so the sublane axis
    # (r_eff) matches the packed-dtype tile (8 f32 / 16 bf16 / 32 int8).
    # Pure reshape: no HBM copy.
    packing = max(8, 32 // max(1, min(x_item, t_item)))
    s = packing // math.gcd(r, packing)
    while s > 1 and n % s != 0:
        s //= 2
    r_eff = r * s
    n_eff = n // s

    x2 = predict.reshape(r_eff, n_eff)
    t2 = target.reshape(r_eff, n_eff)

    # In-kernel chunk (~chunk_elems elements per fori_loop iteration) keeps f32
    # temporaries in vregs -> no block-sized VMEM spills regardless of block size.
    chunk_lanes = max(_LANES, min(4096, (chunk_elems // r_eff) // _LANES * _LANES))

    budget = vmem_budget - 8 * 1024 * 1024
    per_lane_pipeline = 2 * r_eff * (x_item + t_item)  # 2 inputs x 2 buffers, per lane
    if per_lane_pipeline * chunk_lanes > budget and chunk_lanes > _LANES:
        chunk_lanes = _LANES
    # TODO(synk): if B*C is so large that even a 128-lane block overflows VMEM,
    # an extra grid axis over rows would be needed (far beyond BraTS-scale shapes).

    # DMA block: multi-MiB per input to amortise the ~0.35us per-grid-step
    # overhead, capped by the generation VMEM budget and by the data extent.
    max_item = max(x_item, t_item)
    block_lanes = (target_block_bytes // (r_eff * max_item)) // chunk_lanes * chunk_lanes
    lanes_budget = (budget // per_lane_pipeline) // chunk_lanes * chunk_lanes
    block_lanes = max(chunk_lanes, min(block_lanes, lanes_budget))
    block_lanes = min(block_lanes, pl.cdiv(n_eff, chunk_lanes) * chunk_lanes)

    total_blocks = pl.cdiv(n_eff, block_lanes)
    num_slices = max(1, min(num_slices, total_blocks))
    steps_per_slice = pl.cdiv(total_blocks, num_slices)
    needs_clamp = steps_per_slice * num_slices > total_blocks
    has_tail = (n_eff % block_lanes) != 0

    def in_index_map(i, j):
        blk = i * steps_per_slice + j
        if needs_clamp:
            blk = jnp.minimum(blk, total_blocks - 1)  # never DMA past the array
        return (0, blk)

    kernel = _make_kernel(r_eff, block_lanes, chunk_lanes, steps_per_slice,
                          total_blocks, n_eff, has_tail, needs_clamp)

    pipeline_bytes = per_lane_pipeline * block_lanes
    vmem_limit = int(min(vmem_budget,
                         max(32 * 1024 * 1024, pipeline_bytes + 8 * 1024 * 1024)))

    partials = pl.pallas_call(
        kernel,
        out_shape=jax.ShapeDtypeStruct((num_slices, 2, r_eff, 1), jnp.float32),
        grid_spec=pltpu.PrefetchScalarGridSpec(
            num_scalar_prefetch=0,
            grid=(num_slices, steps_per_slice),
            in_specs=[
                pl.BlockSpec((r_eff, block_lanes), in_index_map),
                pl.BlockSpec((r_eff, block_lanes), in_index_map),
            ],
            out_specs=pl.BlockSpec((1, 2, r_eff, 1), lambda i, j: (i, 0, 0, 0)),
        ),
        compiler_params=pltpu.CompilerParams(
            dimension_semantics=("parallel", "arbitrary"),
            vmem_limit_bytes=vmem_limit,
        ),
    )(x2, t2)

    # Tiny finalize in plain JAX: combine slices & sub-rows, then dice / means.
    sums = jnp.sum(partials, axis=(0, 3))            # (2, r_eff)
    sums = jnp.sum(sums.reshape(2, r, s), axis=-1)   # (2, R) per original (b, c) row
    intersect, p_plus_t = sums[0], sums[1]
    dice = 2.0 * (intersect + smooth) / (p_plus_t + smooth)        # (R,)
    per_channel_loss = 1.0 - jnp.mean(dice.reshape(b, c), axis=0)  # (C,)

    # TODO(synk): per-channel `weight` is not implemented (the reference code's
    # weight branch references an undefined `self.weights` and cannot execute).
    if ignore_index is None:
        return jnp.sum(per_channel_loss) / c
    keep = jnp.arange(c) != ignore_index
    return jnp.sum(jnp.where(keep, per_channel_loss, 0.0)) / (c - 1)


def dice_loss_4_brats_ref(predict, target, smooth=1.0, ignore_index=None):
    """Literal JAX port of the PyTorch DiceLoss4BraTS.forward (weight=None)."""
    p = jax.nn.sigmoid(predict.astype(jnp.float32))
    t = target.astype(jnp.float32)
    c = target.shape[1]
    n_used = c - 1 if ignore_index is not None else c
    total = 0.0
    for i in range(c):
        if i == ignore_index:
            continue
        pr = p[:, i].reshape(p.shape[0], -1)
        tg = t[:, i].reshape(t.shape[0], -1)
        num = jnp.sum(pr * tg, axis=1) + smooth
        den = jnp.sum(pr, axis=1) + jnp.sum(tg, axis=1) + smooth
        dice = 2.0 * num / den
        total = total + (1.0 - jnp.mean(dice))
    return total / n_used


if __name__ == "__main__":
    key = jax.random.PRNGKey(0)
    k1, k2, k3, k4, k5, k6 = jax.random.split(key, 6)

    # 1) Small BraTS-style NCHW inputs: raw f32 logits + binary f32 masks.
    B, C, H, W = 2, 4, 16, 16
    logits = jax.random.normal(k1, (B, C, H, W), dtype=jnp.float32)
    masks = (jax.random.uniform(k2, (B, C, H, W)) > 0.5).astype(jnp.float32)
    out = jax.block_until_ready(dice_loss_4_brats(logits, masks))
    ref = dice_loss_4_brats_ref(logits, masks)
    assert jnp.allclose(out, ref, atol=1e-5, rtol=1e-5), (out, ref)

    # 2) Ragged spatial size (not a multiple of 128): exercises multi-block grid,
    #    the 2-slice "parallel" split with a clamped (skipped) duplicate block,
    #    the masked tail block and a multi-chunk in-kernel fori_loop.
    B2, C2, H2, W2 = 2, 4, 66, 66
    logits2 = jax.random.normal(k3, (B2, C2, H2, W2), dtype=jnp.float32)
    masks2 = (jax.random.uniform(k4, (B2, C2, H2, W2)) > 0.5).astype(jnp.float32)
    out2 = jax.block_until_ready(
        dice_loss_4_brats(logits2, masks2, num_slices=2,
                          target_block_bytes=64 * 1024, chunk_elems=1024))
    ref2 = dice_loss_4_brats_ref(logits2, masks2)
    assert jnp.allclose(out2, ref2, atol=1e-5, rtol=1e-5), (out2, ref2)

    # 3) bf16 logits + bf16 masks (half the HBM bytes): exercises the in-register
    #    upcast and the sub-row split matching the bf16 sublane packing.
    logits3 = jax.random.normal(k5, (B, C, H, W), dtype=jnp.bfloat16)
    masks3 = (jax.random.uniform(k6, (B, C, H, W)) > 0.5).astype(jnp.bfloat16)
    out3 = jax.block_until_ready(dice_loss_4_brats(logits3, masks3))
    ref3 = dice_loss_4_brats_ref(logits3, masks3)
    assert jnp.allclose(out3, ref3, atol=1e-4, rtol=1e-4), (out3, ref3)

    # 4) ignore_index path (pure-JAX finalize branch).
    out4 = jax.block_until_ready(dice_loss_4_brats(logits, masks, ignore_index=1))
    ref4 = dice_loss_4_brats_ref(logits, masks, ignore_index=1)
    assert jnp.allclose(out4, ref4, atol=1e-5, rtol=1e-5), (out4, ref4)

    print("KERNEL_OK")
</pallas_src>

<mosaic_0001>
module attributes {stable_mosaic.version = 11 : i64} {
  func.func @kernel(%arg0: i32, %arg1: i32, %arg2: memref<8x2048xf32, #tpu.memory_space<vmem>>, %arg3: memref<8x2048xf32, #tpu.memory_space<vmem>>, %arg4: memref<1x2x8x1xf32, #tpu.memory_space<vmem>>) attributes {dimension_semantics = [#tpu.dimension_semantics<parallel>, #tpu.dimension_semantics<arbitrary>], iteration_bounds = array<i64: 1, 1>, scalar_prefetch = 0 : i64, scratch_operands = 0 : i64, tpu.core_type = #tpu.core_type<tc>, window_params = [{transform_indices = @transform_0, window_bounds = array<i64: 8, 2048>}, {transform_indices = @transform_1, window_bounds = array<i64: 8, 2048>}, {transform_indices = @transform_2, window_bounds = array<i64: 1, 2, 8, 1>}]} {
    %c0_i32 = arith.constant 0 : i32
    %0 = arith.cmpi eq, %arg1, %c0_i32 : i32
    %1 = arith.extui %0 : i1 to i32
    %c0_i32_0 = arith.constant 0 : i32
    %2 = arith.cmpi ne, %1, %c0_i32_0 : i32
    scf.if %2 {
      %cst = arith.constant 0.000000e+00 : f32
      %11 = vector.broadcast %cst : f32 to vector<1x2x8x1xf32>
      %c0 = arith.constant 0 : index
      %c0_5 = arith.constant 0 : index
      %c0_6 = arith.constant 0 : index
      %c0_7 = arith.constant 0 : index
      %12 = vector.load %arg4[%c0, %c0_5, %c0_6, %c0_7] : memref<1x2x8x1xf32, #tpu.memory_space<vmem>>, vector<1x2x8x1xf32>
      tpu.vector_store %arg4[%c0, %c0_5, %c0_6, %c0_7], %11 {strides = array<i32>} : memref<1x2x8x1xf32, #tpu.memory_space<vmem>>, vector<1x2x8x1xf32>,
    } else {
    }
    %c1_i32 = arith.constant 1 : i32
    %3 = arith.muli %arg0, %c1_i32 : i32
    %4 = arith.addi %3, %arg1 : i32
    %c0_i32_1 = arith.constant 0 : i32
    %5 = arith.cmpi eq, %4, %c0_i32_1 : i32
    %6 = arith.extui %5 : i1 to i32
    %c0_i32_2 = arith.constant 0 : i32
    %7 = arith.cmpi ne, %6, %c0_i32_2 : i32
    scf.if %7 {
      %cst = arith.constant 0.000000e+00 : f32
      %11 = vector.broadcast %cst : f32 to vector<8x1xf32>
      %c0_i32_5 = arith.constant 0 : i32
      %c2048_i32 = arith.constant 2048 : i32
      %12 = arith.muli %c0_i32_5, %c2048_i32 : i32
      %13 = tpu.assume_multiple %12, 2048 : i32
      %c0 = arith.constant 0 : index
      %14 = arith.index_cast %13 : i32 to index
      %15 = vector.load %arg2[%c0, %14] : memref<8x2048xf32, #tpu.memory_space<vmem>>, vector<8x2048xf32>
      %c0_6 = arith.constant 0 : index
      %16 = arith.index_cast %13 : i32 to index
      %17 = vector.load %arg3[%c0_6, %16] : memref<8x2048xf32, #tpu.memory_space<vmem>>, vector<8x2048xf32>
      %cst_7 = arith.constant 5.000000e-01 : f32
      %18 = vector.broadcast %cst_7 : f32 to vector<8x2048xf32>
      %19 = arith.mulf %18, %15 : vector<8x2048xf32>
      %20 = math.tanh %19 : vector<8x2048xf32>
      %cst_8 = arith.constant 5.000000e-01 : f32
      %21 = vector.broadcast %cst_8 : f32 to vector<8x2048xf32>
      %22 = arith.mulf %21, %20 : vector<8x2048xf32>
      %cst_9 = arith.constant 5.000000e-01 : f32
      %23 = vector.broadcast %cst_9 : f32 to vector<8x2048xf32>
      %24 = arith.addf %22, %23 : vector<8x2048xf32>
      %25 = tpu.iota {dimensions = array<i32: 1>} : vector<8x2048xi32>
      %c2048_i32_10 = arith.constant 2048 : i32
      %26 = arith.muli %4, %c2048_i32_10 : i32
      %27 = arith.addi %26, %13 : i32
      %28 = vector.broadcast %27 : i32 to vector<8x2048xi32>
      %29 = arith.addi %28, %25 : vector<8x2048xi32>
      %c256_i32 = arith.constant 256 : i32
      %30 = vector.broadcast %c256_i32 : i32 to vector<8x2048xi32>
      %31 = arith.cmpi slt, %29, %30 : vector<8x2048xi32>
      %cst_11 = arith.constant 0.000000e+00 : f32
      %32 = vector.broadcast %cst_11 : f32 to vector<8x2048xf32>
      %33 = arith.select %31, %24, %32 : vector<8x2048xi1>, vector<8x2048xf32>
      %cst_12 = arith.constant 0.000000e+00 : f32
      %34 = vector.broadcast %cst_12 : f32 to vector<8x2048xf32>
      %35 = arith.select %31, %17, %34 : vector<8x2048xi1>, vector<8x2048xf32>
      %36 = arith.mulf %33, %35 : vector<8x2048xf32>
      %cst_13 = arith.constant dense<0.000000e+00> : vector<8xf32>
      %37 = vector.multi_reduction <add>, %36, %cst_13 [1] : vector<8x2048xf32> to vector<8xf32>
      %38 = vector.shape_cast %37 : vector<8xf32> to vector<8x1xf32>
      %39 = arith.addf %11, %38 : vector<8x1xf32>
      %40 = arith.addf %33, %35 : vector<8x2048xf32>
      %cst_14 = arith.constant dense<0.000000e+00> : vector<8xf32>
      %41 = vector.multi_reduction <add>, %40, %cst_14 [1] : vector<8x2048xf32> to vector<8xf32>
      %42 = vector.shape_cast %41 : vector<8xf32> to vector<8x1xf32>
      %43 = arith.addf %11, %42 : vector<8x1xf32>
      %c1_i32_15 = arith.constant 1 : i32
      %c0_16 = arith.constant 0 : index
      %c0_17 = arith.constant 0 : index
      %c0_18 = arith.constant 0 : index
      %c0_19 = arith.constant 0 : index
      %44 = vector.load %arg4[%c0_16, %c0_17, %c0_18, %c0_19] : memref<1x2x8x1xf32, #tpu.memory_space<vmem>>, vector<1x1x8x1xf32>
      %45 = vector.shape_cast %44 : vector<1x1x8x1xf32> to vector<8x1xf32>
      %46 = arith.addf %45, %39 : vector<8x1xf32>
      %c0_20 = arith.constant 0 : index
      %c0_21 = arith.constant 0 : index
      %c0_22 = arith.constant 0 : index
      %c0_23 = arith.constant 0 : index
      %47 = vector.load %arg4[%c0_20, %c0_21, %c0_22, %c0_23] : memref<1x2x8x1xf32, #tpu.memory_space<vmem>>, vector<1x1x8x1xf32>
      %48 = vector.shape_cast %47 : vector<1x1x8x1xf32> to vector<8x1xf32>
      %49 = vector.shape_cast %46 : vector<8x1xf32> to vector<1x1x8x1xf32>
      tpu.vector_store %arg4[%c0_20, %c0_21, %c0_22, %c0_23], %49 {strides = array<i32>} : memref<1x2x8x1xf32, #tpu.memory_space<vmem>>, vector<1x1x8x1xf32>,
      %c0_24 = arith.constant 0 : index
      %c1 = arith.constant 1 : index
      %c0_25 = arith.constant 0 : index
      %c0_26 = arith.constant 0 : index
      %50 = vector.load %arg4[%c0_24, %c1, %c0_25, %c0_26] : memref<1x2x8x1xf32, #tpu.memory_space<vmem>>, vector<1x1x8x1xf32>
      %51 = vector.shape_cast %50 : vector<1x1x8x1xf32> to vector<8x1xf32>
      %52 = arith.addf %51, %43 : vector<8x1xf32>
      %c0_27 = arith.constant 0 : index
      %c1_28 = arith.constant 1 : index
      %c0_29 = arith.constant 0 : index
      %c0_30 = arith.constant 0 : index
      %53 = vector.load %arg4[%c0_27, %c1_28, %c0_29, %c0_30] : memref<1x2x8x1xf32, #tpu.memory_space<vmem>>, vector<1x1x8x1xf32>
      %54 = vector.shape_cast %53 : vector<1x1x8x1xf32> to vector<8x1xf32>
      %55 = vector.shape_cast %52 : vector<8x1xf32> to vector<1x1x8x1xf32>
      tpu.vector_store %arg4[%c0_27, %c1_28, %c0_29, %c0_30], %55 {strides = array<i32>} : memref<1x2x8x1xf32, #tpu.memory_space<vmem>>, vector<1x1x8x1xf32>,
    } else {
    }
    %c0_i32_3 = arith.constant 0 : i32
    %8 = arith.cmpi slt, %4, %c0_i32_3 : i32
    %9 = arith.extui %8 : i1 to i32
    %c0_i32_4 = arith.constant 0 : i32
    %10 = arith.cmpi ne, %9, %c0_i32_4 : i32
    scf.if %10 {
      %cst = arith.constant 0.000000e+00 : f32
      %11 = vector.broadcast %cst : f32 to vector<8x1xf32>
      %c0_i32_5 = arith.constant 0 : i32
      %c2048_i32 = arith.constant 2048 : i32
      %12 = arith.muli %c0_i32_5, %c2048_i32 : i32
      %13 = tpu.assume_multiple %12, 2048 : i32
      %c0 = arith.constant 0 : index
      %14 = arith.index_cast %13 : i32 to index
      %15 = vector.load %arg2[%c0, %14] : memref<8x2048xf32, #tpu.memory_space<vmem>>, vector<8x2048xf32>
      %c0_6 = arith.constant 0 : index
      %16 = arith.index_cast %13 : i32 to index
      %17 = vector.load %arg3[%c0_6, %16] : memref<8x2048xf32, #tpu.memory_space<vmem>>, vector<8x2048xf32>
      %cst_7 = arith.constant 5.000000e-01 : f32
      %18 = vector.broadcast %cst_7 : f32 to vector<8x2048xf32>
      %19 = arith.mulf %18, %15 : vector<8x2048xf32>
      %20 = math.tanh %19 : vector<8x2048xf32>
      %cst_8 = arith.constant 5.000000e-01 : f32
      %21 = vector.broadcast %cst_8 : f32 to vector<8x2048xf32>
      %22 = arith.mulf %21, %20 : vector<8x2048xf32>
      %cst_9 = arith.constant 5.000000e-01 : f32
      %23 = vector.broadcast %cst_9 : f32 to vector<8x2048xf32>
      %24 = arith.addf %22, %23 : vector<8x2048xf32>
      %25 = arith.mulf %24, %17 : vector<8x2048xf32>
      %cst_10 = arith.constant dense<0.000000e+00> : vector<8xf32>
      %26 = vector.multi_reduction <add>, %25, %cst_10 [1] : vector<8x2048xf32> to vector<8xf32>
      %27 = vector.shape_cast %26 : vector<8xf32> to vector<8x1xf32>
      %28 = arith.addf %11, %27 : vector<8x1xf32>
      %29 = arith.addf %24, %17 : vector<8x2048xf32>
      %cst_11 = arith.constant dense<0.000000e+00> : vector<8xf32>
      %30 = vector.multi_reduction <add>, %29, %cst_11 [1] : vector<8x2048xf32> to vector<8xf32>
      %31 = vector.shape_cast %30 : vector<8xf32> to vector<8x1xf32>
      %32 = arith.addf %11, %31 : vector<8x1xf32>
      %c1_i32_12 = arith.constant 1 : i32
      %c0_13 = arith.constant 0 : index
      %c0_14 = arith.constant 0 : index
      %c0_15 = arith.constant 0 : index
      %c0_16 = arith.constant 0 : index
      %33 = vector.load %arg4[%c0_13, %c0_14, %c0_15, %c0_16] : memref<1x2x8x1xf32, #tpu.memory_space<vmem>>, vector<1x1x8x1xf32>
      %34 = vector.shape_cast %33 : vector<1x1x8x1xf32> to vector<8x1xf32>
      %35 = arith.addf %34, %28 : vector<8x1xf32>
      %c0_17 = arith.constant 0 : index
      %c0_18 = arith.constant 0 : index
      %c0_19 = arith.constant 0 : index
      %c0_20 = arith.constant 0 : index
      %36 = vector.load %arg4[%c0_17, %c0_18, %c0_19, %c0_20] : memref<1x2x8x1xf32, #tpu.memory_space<vmem>>, vector<1x1x8x1xf32>
      %37 = vector.shape_cast %36 : vector<1x1x8x1xf32> to vector<8x1xf32>
      %38 = vector.shape_cast %35 : vector<8x1xf32> to vector<1x1x8x1xf32>
      tpu.vector_store %arg4[%c0_17, %c0_18, %c0_19, %c0_20], %38 {strides = array<i32>} : memref<1x2x8x1xf32, #tpu.memory_space<vmem>>, vector<1x1x8x1xf32>,
      %c0_21 = arith.constant 0 : index
      %c1 = arith.constant 1 : index
      %c0_22 = arith.constant 0 : index
      %c0_23 = arith.constant 0 : index
      %39 = vector.load %arg4[%c0_21, %c1, %c0_22, %c0_23] : memref<1x2x8x1xf32, #tpu.memory_space<vmem>>, vector<1x1x8x1xf32>
      %40 = vector.shape_cast %39 : vector<1x1x8x1xf32> to vector<8x1xf32>
      %41 = arith.addf %40, %32 : vector<8x1xf32>
      %c0_24 = arith.constant 0 : index
      %c1_25 = arith.constant 1 : index
      %c0_26 = arith.constant 0 : index
      %c0_27 = arith.constant 0 : index
      %42 = vector.load %arg4[%c0_24, %c1_25, %c0_26, %c0_27] : memref<1x2x8x1xf32, #tpu.memory_space<vmem>>, vector<1x1x8x1xf32>
      %43 = vector.shape_cast %42 : vector<1x1x8x1xf32> to vector<8x1xf32>
      %44 = vector.shape_cast %41 : vector<8x1xf32> to vector<1x1x8x1xf32>
      tpu.vector_store %arg4[%c0_24, %c1_25, %c0_26, %c0_27], %44 {strides = array<i32>} : memref<1x2x8x1xf32, #tpu.memory_space<vmem>>, vector<1x1x8x1xf32>,
    } else {
    }
    return
  }
  func.func @transform_0(%arg0: i32, %arg1: i32) -> (i32, i32) {
    %c1_i32 = arith.constant 1 : i32
    %0 = arith.muli %arg0, %c1_i32 : i32
    %1 = arith.addi %0, %arg1 : i32
    %c0_i32 = arith.constant 0 : i32
    %c0_i32_0 = arith.constant 0 : i32
    return %c0_i32, %1 : i32, i32
  }
  func.func @transform_1(%arg0: i32, %arg1: i32) -> (i32, i32) {
    %c1_i32 = arith.constant 1 : i32
    %0 = arith.muli %arg0, %c1_i32 : i32
    %1 = arith.addi %0, %arg1 : i32
    %c0_i32 = arith.constant 0 : i32
    %c0_i32_0 = arith.constant 0 : i32
    return %c0_i32, %1 : i32, i32
  }
  func.func @transform_2(%arg0: i32, %arg1: i32) -> (i32, i32, i32, i32) {
    %c0_i32 = arith.constant 0 : i32
    %c0_i32_0 = arith.constant 0 : i32
    %c0_i32_1 = arith.constant 0 : i32
    %c0_i32_2 = arith.constant 0 : i32
    return %arg0, %c0_i32, %c0_i32_0, %c0_i32_1 : i32, i32, i32, i32
  }
}

</mosaic_0001>

<llo_original>
// kernel: dice_loss_4_brats.1
$region0: #{dice_loss_4_brats.1}
  #allocation0 [shape = 'u32[]', space=smem, size = 0x4, offset = 0x4, fixed_abs, tag = 'smem constant byte address 0x4 - core index']
  #allocation1 [shape = 'u32[144,128]{1,0:T(1,128)}', space=vmem, size = 0x12000, scoped, tag = 'internal scratch']
  %s0 = inlined_call_operand.vmem [shape: f32[8,256], index: 0, kind: input, shape index: {}]
  %s1 = inlined_call_operand.vmem [shape: f32[8,256], index: 1, kind: input, shape index: {}]
  %s2 = inlined_call_operand.vmem [shape: f32[1,2,8,1], index: 2, kind: output, shape index: {}]
  %s3 = sld [smem:[#allocation0]]
  $region30: #{dice_loss_4_brats.1} parent=0
    _
  %s5 = ssub.s32 1, %s3
  %s6 = scalar_select 0, %s5, %s3
  // Predicated region
  $region2: #{dice_loss_4_brats.1} parent=0 // pred_check
    _
  $region3: #{dice_loss_4_brats.1} parent=0 // pred_check_branch
    %8 = sbr.rel (0) target = $region5
  $region4: #{dice_loss_4_brats.1} parent=0 // pred_region
    %s9 = sadd.s32 0, 0
    %s10 = smul.u32 16, %s9
    %s11 = ssub.s32 2, %s10
    %s12 = smul.u32 128, %s11
    %p13 = scmp.lt.s32.totalorder %s10, 1
    %s14 = scalar_select %p13, %s10, 1
    %s15 = smul.addr %s14, 8
    %s16 = scalar_lea.vmem %s0, %s15
    %s17 = sadd.s32 0, 0
    %s18 = smul.u32 16, %s17
    %s19 = ssub.s32 2, %s18
    %s20 = smul.u32 128, %s19
  $region5: #{dice_loss_4_brats.1} parent=0 // pred_fallthru
    _
  // Predicated region
  $region6: #{dice_loss_4_brats.1} parent=0 // pred_check
    _
  $region7: #{dice_loss_4_brats.1} parent=0 // pred_check_branch
    %22 = sbr.rel (0) target = $region9
  $region8: #{dice_loss_4_brats.1} parent=0 // pred_region
    %s23 = sadd.s32 0, 0
    %s24 = smul.u32 16, %s23
    %s25 = ssub.s32 2, %s24
    %s26 = smul.u32 128, %s25
    %p27 = scmp.lt.s32.totalorder %s24, 1
    %s28 = scalar_select %p27, %s24, 1
    %s29 = smul.addr %s28, 8
    %s30 = scalar_lea.vmem %s1, %s29
    %s31 = sadd.s32 0, 0
    %s32 = smul.u32 16, %s31
    %s33 = ssub.s32 2, %s32
    %s34 = smul.u32 128, %s33
  $region9: #{dice_loss_4_brats.1} parent=0 // pred_fallthru
    _
  %s35 = sadd.s32 0, 0
  %s36 = smul.u32 16, %s35
  %s37 = ssub.s32 2, %s36
  %s38 = smul.u32 128, %s37
  %p39 = scmp.lt.s32.totalorder %s36, 1
  %s40 = scalar_select %p39, %s36, 1
  %s41 = smul.addr %s40, 8
  %s42 = scalar_lea.vmem %s0, %s41
  %s43 = sadd.s32 0, 0
  %s44 = smul.u32 16, %s43
  %s45 = ssub.s32 2, %s44
  %s46 = smul.u32 128, %s45
  %p47 = scmp.lt.s32.totalorder %s44, 1
  %s48 = scalar_select %p47, %s44, 1
  %s49 = smul.addr %s48, 8
  %s50 = scalar_lea.vmem %s1, %s49
  %s51 = sadd.s32 0, 0
  %s52 = smul.u32 16, %s51
  %s53 = ssub.s32 2, %s52
  %s54 = smul.u32 128, %s53
  %p55 = scmp.lt.s32.totalorder %s52, 1
  %s56 = scalar_select %p55, %s52, 1
  %s57 = smul.addr %s56, 8
  %s58 = scalar_lea.vmem %s0, %s57
  %s59 = sadd.s32 0, 0
  %s60 = smul.u32 16, %s59
  %s61 = ssub.s32 2, %s60
  %s62 = smul.u32 128, %s61
  %s63 = sadd.s32 0, 0
  %s64 = smul.u32 16, %s63
  %s65 = ssub.s32 2, %s64
  %s66 = smul.u32 128, %s65
  %p67 = scmp.lt.s32.totalorder %s64, 1
  %s68 = scalar_select %p67, %s64, 1
  %s69 = smul.addr %s68, 8
  %s70 = scalar_lea.vmem %s1, %s69
  %s71 = sadd.s32 0, 0
  %s72 = smul.u32 16, %s71
  %s73 = ssub.s32 2, %s72
  %s74 = smul.u32 128, %s73
  %p75 = scmp.eq.s32.totalorder 0, 0
  // Predicated region
  $region10: #{dice_loss_4_brats.1} parent=0 // pred_check
    %p76 = pneg %p75
  $region11: #{dice_loss_4_brats.1} parent=0 // pred_check_branch
    %78 = sbr.rel (%p76) target = $region13
  $region12: #{dice_loss_4_brats.1} parent=0 // pred_region
    %vm79 = vcmask 7168
    %80 = vst.msk [vmem:[%s2] sm:$0xff] %vm79, 0.0
    %81 = vst.msk [vmem:[%s2 + $0x8] sm:$0xff] %vm79, 0.0
  $region13: #{dice_loss_4_brats.1} parent=0 // pred_fallthru
    _
  %s82 = sadd.s32 0, 0
  %p83 = scmp.eq.s32.totalorder %s82, 0
  // Predicated region
  $region14: #{dice_loss_4_brats.1} parent=0 // pred_check
    %p84 = pneg %p83
  $region15: #{dice_loss_4_brats.1} parent=0 // pred_check_branch
    %86 = sbr.rel (%p84) target = $region17
  $region16: #{dice_loss_4_brats.1} parent=0 // pred_region
    %v87 = vld [vmem:[%s58] sm:$0xff]
    %v88 = vld [vmem:[%s58 + $0x8] sm:$0xff]
    %v89 = vld [vmem:[%s58 + $0x10] sm:$0xff]
    %v90 = vld [vmem:[%s58 + $0x18] sm:$0xff]
    %v91 = vld [vmem:[%s58 + $0x20] sm:$0xff]
    %v92 = vld [vmem:[%s58 + $0x28] sm:$0xff]
    %v93 = vld [vmem:[%s58 + $0x30] sm:$0xff]
    %v94 = vld [vmem:[%s58 + $0x38] sm:$0xff]
    %v95 = vld [vmem:[%s58 + $0x40] sm:$0xff]
    %v96 = vld [vmem:[%s58 + $0x48] sm:$0xff]
    %v97 = vld [vmem:[%s58 + $0x50] sm:$0xff]
    %v98 = vld [vmem:[%s58 + $0x58] sm:$0xff]
    %v99 = vld [vmem:[%s58 + $0x60] sm:$0xff]
    %v100 = vld [vmem:[%s58 + $0x68] sm:$0xff]
    %v101 = vld [vmem:[%s58 + $0x70] sm:$0xff]
    %v102 = vld [vmem:[%s58 + $0x78] sm:$0xff]
    %v103 = vld [vmem:[%s70] sm:$0xff]
    %v104 = vld [vmem:[%s70 + $0x8] sm:$0xff]
    %v105 = vld [vmem:[%s70 + $0x10] sm:$0xff]
    %v106 = vld [vmem:[%s70 + $0x18] sm:$0xff]
    %v107 = vld [vmem:[%s70 + $0x20] sm:$0xff]
    %v108 = vld [vmem:[%s70 + $0x28] sm:$0xff]
    %v109 = vld [vmem:[%s70 + $0x30] sm:$0xff]
    %v110 = vld [vmem:[%s70 + $0x38] sm:$0xff]
    %v111 = vld [vmem:[%s70 + $0x40] sm:$0xff]
    %v112 = vld [vmem:[%s70 + $0x48] sm:$0xff]
    %v113 = vld [vmem:[%s70 + $0x50] sm:$0xff]
    %v114 = vld [vmem:[%s70 + $0x58] sm:$0xff]
    %v115 = vld [vmem:[%s70 + $0x60] sm:$0xff]
    %v116 = vld [vmem:[%s70 + $0x68] sm:$0xff]
    %v117 = vld [vmem:[%s70 + $0x70] sm:$0xff]
    %v118 = vld [vmem:[%s70 + $0x78] sm:$0xff]
    %v119 = vmul.f32 %v87, 0.5
    %v120 = vmul.f32 %v88, 0.5
    %v121 = vmul.f32 %v89, 0.5
    %v122 = vmul.f32 %v90, 0.5
    %v123 = vmul.f32 %v91, 0.5
    %v124 = vmul.f32 %v92, 0.5
    %v125 = vmul.f32 %v93, 0.5
    %v126 = vmul.f32 %v94, 0.5
    %v127 = vmul.f32 %v95, 0.5
    %v128 = vmul.f32 %v96, 0.5
    %v129 = vmul.f32 %v97, 0.5
    %v130 = vmul.f32 %v98, 0.5
    %v131 = vmul.f32 %v99, 0.5
    %v132 = vmul.f32 %v100, 0.5
    %v133 = vmul.f32 %v101, 0.5
    %v134 = vmul.f32 %v102, 0.5
    %v135 = vtanh.pop %v119
    %v136 = vtanh.pop %v120
    %v137 = vtanh.pop %v121
    %v138 = vtanh.pop %v122
    %v139 = vtanh.pop %v123
    %v140 = vtanh.pop %v124
    %v141 = vtanh.pop %v125
    %v142 = vtanh.pop %v126
    %v143 = vtanh.pop %v127
    %v144 = vtanh.pop %v128
    %v145 = vtanh.pop %v129
    %v146 = vtanh.pop %v130
    %v147 = vtanh.pop %v131
    %v148 = vtanh.pop %v132
    %v149 = vtanh.pop %v133
    %v150 = vtanh.pop %v134
    %v151 = vmul.f32 %v135, 0.5
    %v152 = vmul.f32 %v136, 0.5
    %v153 = vmul.f32 %v137, 0.5
    %v154 = vmul.f32 %v138, 0.5
    %v155 = vmul.f32 %v139, 0.5
    %v156 = vmul.f32 %v140, 0.5
    %v157 = vmul.f32 %v141, 0.5
    %v158 = vmul.f32 %v142, 0.5
    %v159 = vmul.f32 %v143, 0.5
    %v160 = vmul.f32 %v144, 0.5
    %v161 = vmul.f32 %v145, 0.5
    %v162 = vmul.f32 %v146, 0.5
    %v163 = vmul.f32 %v147, 0.5
    %v164 = vmul.f32 %v148, 0.5
    %v165 = vmul.f32 %v149, 0.5
    %v166 = vmul.f32 %v150, 0.5
    %v167 = vadd.f32 %v151, 0.5
    %v168 = vadd.f32 %v152, 0.5
    %v169 = vadd.f32 %v153, 0.5
    %v170 = vadd.f32 %v154, 0.5
    %v171 = vadd.f32 %v155, 0.5
    %v172 = vadd.f32 %v156, 0.5
    %v173 = vadd.f32 %v157, 0.5
    %v174 = vadd.f32 %v158, 0.5
    %v175 = vadd.f32 %v159, 0.5
    %v176 = vadd.f32 %v160, 0.5
    %v177 = vadd.f32 %v161, 0.5
    %v178 = vadd.f32 %v162, 0.5
    %v179 = vadd.f32 %v163, 0.5
    %v180 = vadd.f32 %v164, 0.5
    %v181 = vadd.f32 %v165, 0.5
    %v182 = vadd.f32 %v166, 0.5
    %v183 = vlaneseq
    %v184 = vand.u32 %v183, 127
    %v185 = vadd.s32 %v184, 128
    %v186 = vadd.s32 %v184, 256
    %v187 = vadd.s32 %v184, 384
    %v188 = vadd.s32 %v184, 512
    %v189 = vadd.s32 %v184, 640
    %v190 = vadd.s32 %v184, 768
    %v191 = vadd.s32 %v184, 896
    %v192 = vadd.s32 %v184, 1024
    %v193 = vadd.s32 %v184, 1152
    %v194 = vadd.s32 %v184, 1280
    %v195 = vadd.s32 %v184, 1408
    %v196 = vadd.s32 %v184, 1536
    %v197 = vadd.s32 %v184, 1664
    %v198 = vadd.s32 %v184, 1792
    %v199 = vadd.s32 %v184, 1920
    %s200 = smul.u32 %s82, 2048
    %s201 = sadd.s32 %s200, 0
    %v202 = vstv %s201
    %v203 = vadd.s32 %v202, %v184
    %v204 = vadd.s32 %v202, %v185
    %v205 = vadd.s32 %v202, %v186
    %v206 = vadd.s32 %v202, %v187
    %v207 = vadd.s32 %v202, %v188
    %v208 = vadd.s32 %v202, %v189
    %v209 = vadd.s32 %v202, %v190
    %v210 = vadd.s32 %v202, %v191
    %v211 = vadd.s32 %v202, %v192
    %v212 = vadd.s32 %v202, %v193
    %v213 = vadd.s32 %v202, %v194
    %v214 = vadd.s32 %v202, %v195
    %v215 = vadd.s32 %v202, %v196
    %v216 = vadd.s32 %v202, %v197
    %v217 = vadd.s32 %v202, %v198
    %v218 = vadd.s32 %v202, %v199
    %vm219 = vcmp.lt.s32.totalorder %v203, 256
    %vm220 = vcmp.lt.s32.totalorder %v204, 256
    %vm221 = vcmp.lt.s32.totalorder %v205, 256
    %vm222 = vcmp.lt.s32.totalorder %v206, 256
    %vm223 = vcmp.lt.s32.totalorder %v207, 256
    %vm224 = vcmp.lt.s32.totalorder %v208, 256
    %vm225 = vcmp.lt.s32.totalorder %v209, 256
    %vm226 = vcmp.lt.s32.totalorder %v210, 256
    %vm227 = vcmp.lt.s32.totalorder %v211, 256
    %vm228 = vcmp.lt.s32.totalorder %v212, 256
    %vm229 = vcmp.lt.s32.totalorder %v213, 256
    %vm230 = vcmp.lt.s32.totalorder %v214, 256
    %vm231 = vcmp.lt.s32.totalorder %v215, 256
    %vm232 = vcmp.lt.s32.totalorder %v216, 256
    %vm233 = vcmp.lt.s32.totalorder %v217, 256
    %vm234 = vcmp.lt.s32.totalorder %v218, 256
    %v235 = vsel %vm219, %v167, 0.0
    %v236 = vsel %vm220, %v168, 0.0
    %v237 = vsel %vm221, %v169, 0.0
    %v238 = vsel %vm222, %v170, 0.0
    %v239 = vsel %vm223, %v171, 0.0
    %v240 = vsel %vm224, %v172, 0.0
    %v241 = vsel %vm225, %v173, 0.0
    %v242 = vsel %vm226, %v174, 0.0
    %v243 = vsel %vm227, %v175, 0.0
    %v244 = vsel %vm228, %v176, 0.0
    %v245 = vsel %vm229, %v177, 0.0
    %v246 = vsel %vm230, %v178, 0.0
    %v247 = vsel %vm231, %v179, 0.0
    %v248 = vsel %vm232, %v180, 0.0
    %v249 = vsel %vm233, %v181, 0.0
    %v250 = vsel %vm234, %v182, 0.0
    %v251 = vsel %vm219, %v103, 0.0
    %v252 = vsel %vm220, %v104, 0.0
    %v253 = vsel %vm221, %v105, 0.0
    %v254 = vsel %vm222, %v106, 0.0
    %v255 = vsel %vm223, %v107, 0.0
    %v256 = vsel %vm224, %v108, 0.0
    %v257 = vsel %vm225, %v109, 0.0
    %v258 = vsel %vm226, %v110, 0.0
    %v259 = vsel %vm227, %v111, 0.0
    %v260 = vsel %vm228, %v112, 0.0
    %v261 = vsel %vm229, %v113, 0.0
    %v262 = vsel %vm230, %v114, 0.0
    %v263 = vsel %vm231, %v115, 0.0
    %v264 = vsel %vm232, %v116, 0.0
    %v265 = vsel %vm233, %v117, 0.0
    %v266 = vsel %vm234, %v118, 0.0
    %v267 = vmul.f32 %v235, %v251
    %v268 = vmul.f32 %v236, %v252
    %v269 = vmul.f32 %v237, %v253
    %v270 = vmul.f32 %v238, %v254
    %v271 = vmul.f32 %v239, %v255
    %v272 = vmul.f32 %v240, %v256
    %v273 = vmul.f32 %v241, %v257
    %v274 = vmul.f32 %v242, %v258
    %v275 = vmul.f32 %v243, %v259
    %v276 = vmul.f32 %v244, %v260
    %v277 = vmul.f32 %v245, %v261
    %v278 = vmul.f32 %v246, %v262
    %v279 = vmul.f32 %v247, %v263
    %v280 = vmul.f32 %v248, %v264
    %v281 = vmul.f32 %v249, %v265
    %v282 = vmul.f32 %v250, %v266
    %v283 = vadd.f32 %v267, %v268
    %v284 = vadd.f32 %v283, %v269
    %v285 = vadd.f32 %v284, %v270
    %v286 = vadd.f32 %v285, %v271
    %v287 = vadd.f32 %v286, %v272
    %v288 = vadd.f32 %v287, %v273
    %v289 = vadd.f32 %v288, %v274
    %v290 = vadd.f32 %v289, %v275
    %v291 = vadd.f32 %v290, %v276
    %v292 = vadd.f32 %v291, %v277
    %v293 = vadd.f32 %v292, %v278
    %v294 = vadd.f32 %v293, %v279
    %v295 = vadd.f32 %v294, %v280
    %v296 = vadd.f32 %v295, %v281
    %v297 = vadd.f32 %v296, %v282
    %298 = vadd.xlane.f32.xlu0 %v297
    %v299 = vpop.xlane.xlu0 %298
    %v300 = vadd.f32 %v299, 0.0
    %v301 = vadd.f32 %v235, %v251
    %v302 = vadd.f32 %v236, %v252
    %v303 = vadd.f32 %v237, %v253
    %v304 = vadd.f32 %v238, %v254
    %v305 = vadd.f32 %v239, %v255
    %v306 = vadd.f32 %v240, %v256
    %v307 = vadd.f32 %v241, %v257
    %v308 = vadd.f32 %v242, %v258
    %v309 = vadd.f32 %v243, %v259
    %v310 = vadd.f32 %v244, %v260
    %v311 = vadd.f32 %v245, %v261
    %v312 = vadd.f32 %v246, %v262
    %v313 = vadd.f32 %v247, %v263
    %v314 = vadd.f32 %v248, %v264
    %v315 = vadd.f32 %v249, %v265
    %v316 = vadd.f32 %v250, %v266
    %v317 = vadd.f32 %v301, %v302
    %v318 = vadd.f32 %v317, %v303
    %v319 = vadd.f32 %v318, %v304
    %v320 = vadd.f32 %v319, %v305
    %v321 = vadd.f32 %v320, %v306
    %v322 = vadd.f32 %v321, %v307
    %v323 = vadd.f32 %v322, %v308
    %v324 = vadd.f32 %v323, %v309
    %v325 = vadd.f32 %v324, %v310
    %v326 = vadd.f32 %v325, %v311
    %v327 = vadd.f32 %v326, %v312
    %v328 = vadd.f32 %v327, %v313
    %v329 = vadd.f32 %v328, %v314
    %v330 = vadd.f32 %v329, %v315
    %v331 = vadd.f32 %v330, %v316
    %332 = vadd.xlane.f32.xlu0 %v331
    %v333 = vpop.xlane.xlu0 %332
    %v334 = vadd.f32 %v333, 0.0
    %v335 = vld [vmem:[%s2] sm:$0xff]
    %v336 = vadd.f32 %v335, %v300
    %vm337 = vcmask 7168
    %338 = vst.msk [vmem:[%s2] sm:$0xff] %vm337, %v336
    %s339 = scalar_lea.vmem %s2, 8
    %v340 = vld [vmem:[%s339] sm:$0xff]
    %v341 = vadd.f32 %v340, %v334
    %342 = vst.msk [vmem:[%s339] sm:$0xff] %vm337, %v341
  $region17: #{dice_loss_4_brats.1} parent=0 // pred_fallthru
    _
  %p343 = scmp.lt.s32.totalorder %s82, 0
  // Predicated region
  $region18: #{dice_loss_4_brats.1} parent=0 // pred_check
    %p344 = pneg %p343
  $region19: #{dice_loss_4_brats.1} parent=0 // pred_check_branch
    %346 = sbr.rel (%p344) target = $region21
  $region20: #{dice_loss_4_brats.1} parent=0 // pred_region
    %v347 = vld [vmem:[%s58] sm:$0xff]
    %v348 = vld [vmem:[%s58 + $0x8] sm:$0xff]
    %v349 = vld [vmem:[%s58 + $0x10] sm:$0xff]
    %v350 = vld [vmem:[%s58 + $0x18] sm:$0xff]
    %v351 = vld [vmem:[%s58 + $0x20] sm:$0xff]
    %v352 = vld [vmem:[%s58 + $0x28] sm:$0xff]
    %v353 = vld [vmem:[%s58 + $0x30] sm:$0xff]
    %v354 = vld [vmem:[%s58 + $0x38] sm:$0xff]
    %v355 = vld [vmem:[%s58 + $0x40] sm:$0xff]
    %v356 = vld [vmem:[%s58 + $0x48] sm:$0xff]
    %v357 = vld [vmem:[%s58 + $0x50] sm:$0xff]
    %v358 = vld [vmem:[%s58 + $0x58] sm:$0xff]
    %v359 = vld [vmem:[%s58 + $0x60] sm:$0xff]
    %v360 = vld [vmem:[%s58 + $0x68] sm:$0xff]
    %v361 = vld [vmem:[%s58 + $0x70] sm:$0xff]
    %v362 = vld [vmem:[%s58 + $0x78] sm:$0xff]
    %v363 = vld [vmem:[%s70] sm:$0xff]
    %v364 = vld [vmem:[%s70 + $0x8] sm:$0xff]
    %v365 = vld [vmem:[%s70 + $0x10] sm:$0xff]
    %v366 = vld [vmem:[%s70 + $0x18] sm:$0xff]
    %v367 = vld [vmem:[%s70 + $0x20] sm:$0xff]
    %v368 = vld [vmem:[%s70 + $0x28] sm:$0xff]
    %v369 = vld [vmem:[%s70 + $0x30] sm:$0xff]
    %v370 = vld [vmem:[%s70 + $0x38] sm:$0xff]
    %v371 = vld [vmem:[%s70 + $0x40] sm:$0xff]
    %v372 = vld [vmem:[%s70 + $0x48] sm:$0xff]
    %v373 = vld [vmem:[%s70 + $0x50] sm:$0xff]
    %v374 = vld [vmem:[%s70 + $0x58] sm:$0xff]
    %v375 = vld [vmem:[%s70 + $0x60] sm:$0xff]
    %v376 = vld [vmem:[%s70 + $0x68] sm:$0xff]
    %v377 = vld [vmem:[%s70 + $0x70] sm:$0xff]
    %v378 = vld [vmem:[%s70 + $0x78] sm:$0xff]
    %v379 = vmul.f32 %v347, 0.5
    %v380 = vmul.f32 %v348, 0.5
    %v381 = vmul.f32 %v349, 0.5
    %v382 = vmul.f32 %v350, 0.5
    %v383 = vmul.f32 %v351, 0.5
    %v384 = vmul.f32 %v352, 0.5
    %v385 = vmul.f32 %v353, 0.5
    %v386 = vmul.f32 %v354, 0.5
    %v387 = vmul.f32 %v355, 0.5
    %v388 = vmul.f32 %v356, 0.5
    %v389 = vmul.f32 %v357, 0.5
    %v390 = vmul.f32 %v358, 0.5
    %v391 = vmul.f32 %v359, 0.5
    %v392 = vmul.f32 %v360, 0.5
    %v393 = vmul.f32 %v361, 0.5
    %v394 = vmul.f32 %v362, 0.5
    %v395 = vtanh.pop %v379
    %v396 = vtanh.pop %v380
    %v397 = vtanh.pop %v381
    %v398 = vtanh.pop %v382
    %v399 = vtanh.pop %v383
    %v400 = vtanh.pop %v384
    %v401 = vtanh.pop %v385
    %v402 = vtanh.pop %v386
    %v403 = vtanh.pop %v387
    %v404 = vtanh.pop %v388
    %v405 = vtanh.pop %v389
    %v406 = vtanh.pop %v390
    %v407 = vtanh.pop %v391
    %v408 = vtanh.pop %v392
    %v409 = vtanh.pop %v393
    %v410 = vtanh.pop %v394
    %v411 = vmul.f32 %v395, 0.5
    %v412 = vmul.f32 %v396, 0.5
    %v413 = vmul.f32 %v397, 0.5
    %v414 = vmul.f32 %v398, 0.5
    %v415 = vmul.f32 %v399, 0.5
    %v416 = vmul.f32 %v400, 0.5
    %v417 = vmul.f32 %v401, 0.5
    %v418 = vmul.f32 %v402, 0.5
    %v419 = vmul.f32 %v403, 0.5
    %v420 = vmul.f32 %v404, 0.5
    %v421 = vmul.f32 %v405, 0.5
    %v422 = vmul.f32 %v406, 0.5
    %v423 = vmul.f32 %v407, 0.5
    %v424 = vmul.f32 %v408, 0.5
    %v425 = vmul.f32 %v409, 0.5
    %v426 = vmul.f32 %v410, 0.5
    %v427 = vadd.f32 %v411, 0.5
    %v428 = vadd.f32 %v412, 0.5
    %v429 = vadd.f32 %v413, 0.5
    %v430 = vadd.f32 %v414, 0.5
    %v431 = vadd.f32 %v415, 0.5
    %v432 = vadd.f32 %v416, 0.5
    %v433 = vadd.f32 %v417, 0.5
    %v434 = vadd.f32 %v418, 0.5
    %v435 = vadd.f32 %v419, 0.5
    %v436 = vadd.f32 %v420, 0.5
    %v437 = vadd.f32 %v421, 0.5
    %v438 = vadd.f32 %v422, 0.5
    %v439 = vadd.f32 %v423, 0.5
    %v440 = vadd.f32 %v424, 0.5
    %v441 = vadd.f32 %v425, 0.5
    %v442 = vadd.f32 %v426, 0.5
    %v443 = vmul.f32 %v427, %v363
    %v444 = vmul.f32 %v428, %v364
    %v445 = vmul.f32 %v429, %v365
    %v446 = vmul.f32 %v430, %v366
    %v447 = vmul.f32 %v431, %v367
    %v448 = vmul.f32 %v432, %v368
    %v449 = vmul.f32 %v433, %v369
    %v450 = vmul.f32 %v434, %v370
    %v451 = vmul.f32 %v435, %v371
    %v452 = vmul.f32 %v436, %v372
    %v453 = vmul.f32 %v437, %v373
    %v454 = vmul.f32 %v438, %v374
    %v455 = vmul.f32 %v439, %v375
    %v456 = vmul.f32 %v440, %v376
    %v457 = vmul.f32 %v441, %v377
    %v458 = vmul.f32 %v442, %v378
    %v459 = vadd.f32 %v443, %v444
    %v460 = vadd.f32 %v459, %v445
    %v461 = vadd.f32 %v460, %v446
    %v462 = vadd.f32 %v461, %v447
    %v463 = vadd.f32 %v462, %v448
    %v464 = vadd.f32 %v463, %v449
    %v465 = vadd.f32 %v464, %v450
    %v466 = vadd.f32 %v465, %v451
    %v467 = vadd.f32 %v466, %v452
    %v468 = vadd.f32 %v467, %v453
    %v469 = vadd.f32 %v468, %v454
    %v470 = vadd.f32 %v469, %v455
    %v471 = vadd.f32 %v470, %v456
    %v472 = vadd.f32 %v471, %v457
    %v473 = vadd.f32 %v472, %v458
    %474 = vadd.xlane.f32.xlu0 %v473
    %v475 = vpop.xlane.xlu0 %474
    %v476 = vadd.f32 %v475, 0.0
    %v477 = vadd.f32 %v427, %v363
    %v478 = vadd.f32 %v428, %v364
    %v479 = vadd.f32 %v429, %v365
    %v480 = vadd.f32 %v430, %v366
    %v481 = vadd.f32 %v431, %v367
    %v482 = vadd.f32 %v432, %v368
    %v483 = vadd.f32 %v433, %v369
    %v484 = vadd.f32 %v434, %v370
    %v485 = vadd.f32 %v435, %v371
    %v486 = vadd.f32 %v436, %v372
    %v487 = vadd.f32 %v437, %v373
    %v488 = vadd.f32 %v438, %v374
    %v489 = vadd.f32 %v439, %v375
    %v490 = vadd.f32 %v440, %v376
    %v491 = vadd.f32 %v441, %v377
    %v492 = vadd.f32 %v442, %v378
    %v493 = vadd.f32 %v477, %v478
    %v494 = vadd.f32 %v493, %v479
    %v495 = vadd.f32 %v494, %v480
    %v496 = vadd.f32 %v495, %v481
    %v497 = vadd.f32 %v496, %v482
    %v498 = vadd.f32 %v497, %v483
    %v499 = vadd.f32 %v498, %v484
    %v500 = vadd.f32 %v499, %v485
    %v501 = vadd.f32 %v500, %v486
    %v502 = vadd.f32 %v501, %v487
    %v503 = vadd.f32 %v502, %v488
    %v504 = vadd.f32 %v503, %v489
    %v505 = vadd.f32 %v504, %v490
    %v506 = vadd.f32 %v505, %v491
    %v507 = vadd.f32 %v506, %v492
    %508 = vadd.xlane.f32.xlu0 %v507
    %v509 = vpop.xlane.xlu0 %508
    %v510 = vadd.f32 %v509, 0.0
    %v511 = vld [vmem:[%s2] sm:$0xff]
    %v512 = vadd.f32 %v511, %v476
    %vm513 = vcmask 7168
    %514 = vst.msk [vmem:[%s2] sm:$0xff] %vm513, %v512
    %s515 = scalar_lea.vmem %s2, 8
    %v516 = vld [vmem:[%s515] sm:$0xff]
    %v517 = vadd.f32 %v516, %v510
    %518 = vst.msk [vmem:[%s515] sm:$0xff] %vm513, %v517
  $region21: #{dice_loss_4_brats.1} parent=0 // pred_fallthru
    _
  // Predicated region
  $region22: #{dice_loss_4_brats.1} parent=0 // pred_check
    _
  $region23: #{dice_loss_4_brats.1} parent=0 // pred_check_branch
    %520 = sbr.rel (0) target = $region25
  $region24: #{dice_loss_4_brats.1} parent=0 // pred_region
    _
  $region25: #{dice_loss_4_brats.1} parent=0 // pred_fallthru
    _
  // Predicated region
  $region26: #{dice_loss_4_brats.1} parent=0 // pred_check
    _
  $region27: #{dice_loss_4_brats.1} parent=0 // pred_check_branch
    %522 = sbr.rel (0) target = $region29
  $region28: #{dice_loss_4_brats.1} parent=0 // pred_region
    _
  $region29: #{dice_loss_4_brats.1} parent=0 // pred_fallthru
    _

</llo_original>
